<compile_context>
chip_gen: v5e
topology: v5e:2x2
jax: 0.10.0
libtpu: 0.0.40
codegen_flags: <defaults>
</compile_context>

<pallas_src>
import functools

import jax
import jax.numpy as jnp
from jax.experimental import pallas as pl
from jax.experimental.pallas import tpu as pltpu

LANE = 128
NHB = 16  # halo block rows (bf16 sublane tile)


def _round_up(v, m):
    return (v + m - 1) // m * m


def _pad_to(a, shape):
    pads = [(0, t - s) for s, t in zip(a.shape, shape)]
    return jnp.pad(a, pads)


def _vmem_limit_bytes():
    # ~3/4 of physical VMEM, capped at 96 MiB: 96 MiB on v5e/v6e (128 MiB
    # parts), 48 MiB on v7x (64 MiB part) -- leaves compiler-scratch headroom.
    try:
        cap = pltpu.get_tpu_info().vmem_capacity_bytes
    except Exception:
        cap = 64 * 1024 * 1024
    return int(min(cap * 3 // 4, 96 * 1024 * 1024))


def fire_kernel(x_ref, xprev_ref, xnext_ref,
                wsq_ref, ssq_ref, bsq_ref,
                wex_ref, se1_ref, be1_ref, se3_ref, be3_ref,
                out_ref, *, ce1p, ce3p):
    t = pl.program_id(0)
    nt = pl.num_programs(0)

    wsq = wsq_ref[...]          # (Cin_p, Csq_p) bf16
    ssq = ssq_ref[...]          # (1, Csq_p)     f32
    bsq = bsq_ref[...]          # (1, Csq_p)     f32

    def squeeze(xb):            # bf16 (R, Cin_p) -> bf16 (R, Csq_p)
        acc = jnp.dot(xb, wsq, preferred_element_type=jnp.float32)
        return jnp.maximum(acc * ssq + bsq, 0.0).astype(jnp.bfloat16)

    # squeeze + BN1 + ReLU for this L tile
    sq = squeeze(x_ref[0])                                    # (TL, Csq_p)

    # one-row halos: slice the neighbour block to its boundary row BEFORE the
    # matmul (16x less halo MXU/VPU work, no cross-sublane result extract)
    sq_prev = squeeze(xprev_ref[0, NHB - 1:NHB, :])           # (1, Csq_p)
    sq_next = squeeze(xnext_ref[0, 0:1, :])                   # (1, Csq_p)

    # fused expand matmul: columns = [ e1 | 3x3 tap(-1) | tap(0) | tap(+1) ]
    wex = wex_ref[...]
    z = jnp.dot(sq, wex, preferred_element_type=jnp.float32)

    z1 = z[:, :ce1p]                               # expand1x1 pre-activation
    za = z[:, ce1p:ce1p + ce3p]                    # tap applied to sq[l-1]
    zb = z[:, ce1p + ce3p:ce1p + 2 * ce3p]         # tap applied to sq[l]
    zc = z[:, ce1p + 2 * ce3p:]                    # tap applied to sq[l+1]

    # boundary-row contributions; zeroed at the true sequence ends so the
    # conv's zero padding is reproduced exactly
    w3a = wex[:, ce1p:ce1p + ce3p]
    w3c = wex[:, ce1p + 2 * ce3p:]
    c_prev = jnp.dot(sq_prev, w3a, preferred_element_type=jnp.float32)
    c_next = jnp.dot(sq_next, w3c, preferred_element_type=jnp.float32)
    c_prev = jnp.where(t > 0, c_prev, 0.0)         # (1, ce3p)
    c_next = jnp.where(t < nt - 1, c_next, 0.0)    # (1, ce3p)

    # +/-1 row shifts via XLU rolls + masked injection of the halo rows
    # (replaces sublane-misaligned concats that materialized VMEM copies)
    tl = z.shape[0]
    row = jax.lax.broadcasted_iota(jnp.int32, (tl, 1), 0)
    dn = pltpu.roll(za, 1, axis=0)          # row i <- za[i-1]; row 0 replaced
    up = pltpu.roll(zc, tl - 1, axis=0)     # row i <- zc[i+1]; row tl-1 replaced
    e3_acc = (zb
              + jnp.where(row == 0, c_prev, dn)
              + jnp.where(row == tl - 1, c_next, up))

    e1 = jnp.maximum(z1 * se1_ref[...] + be1_ref[...], 0.0)
    e3 = jnp.maximum(e3_acc * se3_ref[...] + be3_ref[...], 0.0)

    # direct lane-aligned slice stores: no concat, no redundant final ReLU
    out_ref[0, :, :ce1p] = e1.astype(out_ref.dtype)
    out_ref[0, :, ce1p:] = e3.astype(out_ref.dtype)


def fire_forward(x_nlc, params, *, l_tile=512, out_dtype=jnp.bfloat16):
    """Fire forward pass.

    x_nlc: (N, L, Cin) float32, channels-last.
    Returns an (N, L, Ce1p + Ce3p) `out_dtype` array with expand1x1 channels
    at lanes [0, Ce1) and expand3x3 channels at lanes [Ce1p, Ce1p + Ce3);
    padded lanes are exactly zero.  Use `unpad_fire_output` only if a densely
    concatenated layout is required (it costs an extra HBM pass).
    """
    N, L, Cin = x_nlc.shape
    wsq, ssq, bsq = params["wsq"], params["ssq"], params["bsq"]
    we1, se1, be1 = params["we1"], params["se1"], params["be1"]
    we3, se3, be3 = params["we3"], params["se3"], params["be3"]
    Csq, Ce1 = we1.shape
    Ce3 = we3.shape[2]

    # TODO(synk): generic L would need a masked tail tile; require 16-aligned L.
    assert L % 16 == 0, "fire_forward requires L % 16 == 0"

    # L tile: largest multiple of 16 that divides L and is <= l_tile.  Since
    # L % 16 == 0 the search always succeeds (worst case TL = 16), so it can
    # never silently fall back to an oversized full-L tile.
    TL = L
    if L > l_tile:
        for cand in range(l_tile - l_tile % 16, 15, -16):
            if L % cand == 0:
                TL = cand
                break
    T = L // TL
    NB = TL // NHB           # halo-block index stride per L tile
    max_hb = L // NHB - 1

    Cin_p = _round_up(Cin, LANE)
    Csq_p = _round_up(Csq, LANE)
    Ce1p = _round_up(Ce1, LANE)
    Ce3p = _round_up(Ce3, LANE)
    Cout_p = Ce1p + Ce3p

    # ---- pad + cast operands (zero padding keeps padded lanes exactly 0) ----
    xp = _pad_to(x_nlc, (N, L, Cin_p)).astype(jnp.bfloat16)
    wsq_p = _pad_to(wsq, (Cin_p, Csq_p)).astype(jnp.bfloat16)
    we1_p = _pad_to(we1, (Csq_p, Ce1p))
    we3_p = _pad_to(we3, (3, Csq_p, Ce3p))
    # fused expand weight: [ we1 | we3 tap(-1) | tap(0) | tap(+1) ]
    wex = jnp.concatenate([we1_p, we3_p[0], we3_p[1], we3_p[2]],
                          axis=1).astype(jnp.bfloat16)

    pad_v = lambda v, c: _pad_to(v.reshape(1, -1), (1, c)).astype(jnp.float32)
    ssq_p, bsq_p = pad_v(ssq, Csq_p), pad_v(bsq, Csq_p)
    se1_p, be1_p = pad_v(se1, Ce1p), pad_v(be1, Ce1p)
    se3_p, be3_p = pad_v(se3, Ce3p), pad_v(be3, Ce3p)

    full2 = lambda t, n: (0, 0)

    grid_spec = pltpu.PrefetchScalarGridSpec(
        num_scalar_prefetch=0,
        # large-extent L-tile axis first so v7x's two TensorCores stay busy
        # even when N is 1-2; both axes are independent -> "parallel".
        grid=(T, N),
        in_specs=[
            pl.BlockSpec((1, TL, Cin_p), lambda t, n: (n, t, 0)),       # x tile
            pl.BlockSpec((1, NHB, Cin_p),                               # prev halo
                         lambda t, n: (n, jnp.maximum(t * NB - 1, 0), 0)),
            pl.BlockSpec((1, NHB, Cin_p),                               # next halo
                         lambda t, n: (n, jnp.minimum((t + 1) * NB, max_hb), 0)),
            pl.BlockSpec((Cin_p, Csq_p), full2),                        # wsq
            pl.BlockSpec((1, Csq_p), full2),                            # ssq
            pl.BlockSpec((1, Csq_p), full2),                            # bsq
            pl.BlockSpec((Csq_p, Ce1p + 3 * Ce3p), full2),              # fused W
            pl.BlockSpec((1, Ce1p), full2),                             # se1
            pl.BlockSpec((1, Ce1p), full2),                             # be1
            pl.BlockSpec((1, Ce3p), full2),                             # se3
            pl.BlockSpec((1, Ce3p), full2),                             # be3
        ],
        out_specs=pl.BlockSpec((1, TL, Cout_p), lambda t, n: (n, t, 0)),
    )

    out_bytes = jnp.dtype(out_dtype).itemsize
    flops = 2 * N * L * (Cin_p * Csq_p + Csq_p * (Ce1p + 3 * Ce3p))
    bytes_accessed = (int(xp.size) * 2                      # x tiles (bf16)
                      + N * T * 2 * NHB * Cin_p * 2         # halo re-reads
                      + N * L * Cout_p * out_bytes          # output writeback
                      + int(wsq_p.size) * 2 + int(wex.size) * 2)

    return pl.pallas_call(
        functools.partial(fire_kernel, ce1p=Ce1p, ce3p=Ce3p),
        out_shape=jax.ShapeDtypeStruct((N, L, Cout_p), out_dtype),
        grid_spec=grid_spec,
        compiler_params=pltpu.CompilerParams(
            dimension_semantics=("parallel", "parallel"),
            vmem_limit_bytes=_vmem_limit_bytes(),
        ),
        cost_estimate=pl.CostEstimate(
            flops=flops, transcendentals=0, bytes_accessed=bytes_accessed),
    )(xp, xp, xp, wsq_p, ssq_p, bsq_p, wex, se1_p, be1_p, se3_p, be3_p)


def unpad_fire_output(out_padded, expand1x1_planes, expand3x3_planes):
    """Repack the padded kernel output to a dense (N, L, Ce1+Ce3) array.

    Note: this is a full extra read+write pass over the output in XLA; prefer
    consuming the padded, lane-aligned layout directly when possible.
    """
    ce1p = _round_up(expand1x1_planes, LANE)
    return jnp.concatenate(
        [out_padded[..., :expand1x1_planes],
         out_padded[..., ce1p:ce1p + expand3x3_planes]], axis=-1)


def make_fire_params(key, inplanes, squeeze_planes, expand1x1_planes,
                     expand3x3_planes, eps=1e-5):
    """Deterministic synthetic parameters matching the PyTorch module in eval
    mode: conv bias + BatchNorm running stats folded into per-channel
    scale/shift applied after each conv matmul."""
    ks = jax.random.split(key, 18)
    conv_w = lambda k, shape: jax.random.normal(k, shape, jnp.float32) * 0.1

    def fold_bn(conv_bias, gamma, beta, mean, var):
        s = gamma / jnp.sqrt(var + eps)
        return s, s * (conv_bias - mean) + beta

    def bn_stats(k0, k1, k2, k3, c):
        return (1.0 + 0.1 * jax.random.normal(k0, (c,)),
                0.1 * jax.random.normal(k1, (c,)),
                0.1 * jax.random.normal(k2, (c,)),
                jnp.abs(jax.random.normal(k3, (c,))) + 0.5)

    # squeeze: PyTorch weight (Csq, Cin, 1) -> (Cin, Csq)
    wsq = conv_w(ks[0], (inplanes, squeeze_planes))
    ssq, bsq = fold_bn(conv_w(ks[1], (squeeze_planes,)),
                       *bn_stats(ks[2], ks[3], ks[4], ks[5], squeeze_planes))

    # expand1x1: (Ce1, Csq, 1) -> (Csq, Ce1)
    we1 = conv_w(ks[6], (squeeze_planes, expand1x1_planes))
    se1, be1 = fold_bn(conv_w(ks[7], (expand1x1_planes,)),
                       *bn_stats(ks[8], ks[9], ks[10], ks[11],
                                 expand1x1_planes))

    # expand3x3: PyTorch weight (Ce3, Csq, 3) -> (3, Csq, Ce3) (tap, in, out)
    we3 = conv_w(ks[12], (3, squeeze_planes, expand3x3_planes))
    se3, be3 = fold_bn(conv_w(ks[13], (expand3x3_planes,)),
                       *bn_stats(ks[14], ks[15], ks[16], ks[17],
                                 expand3x3_planes))

    return dict(wsq=wsq, ssq=ssq, bsq=bsq,
                we1=we1, se1=se1, be1=be1,
                we3=we3, se3=se3, be3=be3)


def fire_reference(x_nlc, p):
    """Pure-JAX reference in the same mixed precision as the kernel
    (bf16 matmul operands, f32 accumulate and epilogues)."""
    b = lambda a: a.astype(jnp.bfloat16)
    dot = lambda a, w: jnp.einsum('nlc,cd->nld', a, w,
                                  preferred_element_type=jnp.float32)
    sq = jnp.maximum(dot(b(x_nlc), b(p["wsq"])) * p["ssq"] + p["bsq"], 0.0)
    sq_b = b(sq)
    e1 = jnp.maximum(dot(sq_b, b(p["we1"])) * p["se1"] + p["be1"], 0.0)
    zrow = jnp.zeros_like(sq_b[:, :1, :])
    sq_prev = jnp.concatenate([zrow, sq_b[:, :-1, :]], axis=1)
    sq_next = jnp.concatenate([sq_b[:, 1:, :], zrow], axis=1)
    e3 = (dot(sq_prev, b(p["we3"][0])) + dot(sq_b, b(p["we3"][1]))
          + dot(sq_next, b(p["we3"][2])))
    e3 = jnp.maximum(e3 * p["se3"] + p["be3"], 0.0)
    # the module's post-concat ReLU is a no-op on already-ReLU'd branches
    return jnp.concatenate([e1, e3], axis=-1)


if __name__ == "__main__":
    # Fire(inplanes=8, squeeze_planes=4, expand1x1_planes=8, expand3x3_planes=8)
    N, Cin, L = 2, 8, 16
    Csq, Ce1, Ce3 = 4, 8, 8

    key = jax.random.PRNGKey(0)
    kx, kp, kx2 = jax.random.split(key, 3)
    # PyTorch Conv1d layout is NCL; the kernel uses NLC (channels on lanes).
    x_ncl = jax.random.normal(kx, (N, Cin, L), jnp.float32)
    x_nlc = jnp.transpose(x_ncl, (0, 2, 1))

    params = make_fire_params(kp, Cin, Csq, Ce1, Ce3)

    # single-tile path
    out_p = jax.block_until_ready(fire_forward(x_nlc, params))
    out = unpad_fire_output(out_p, Ce1, Ce3).astype(jnp.float32)
    ref = fire_reference(x_nlc, params)
    assert out.shape == (N, L, Ce1 + Ce3)
    err = float(jnp.max(jnp.abs(out - ref)))
    assert jnp.allclose(out, ref, atol=2e-2, rtol=2e-2), err

    # multi-tile path (exercises the halo rows + roll-based shift injection)
    L2 = 32
    x2 = jnp.transpose(jax.random.normal(kx2, (N, Cin, L2), jnp.float32),
                       (0, 2, 1))
    out2_p = jax.block_until_ready(fire_forward(x2, params, l_tile=16))
    out2 = unpad_fire_output(out2_p, Ce1, Ce3).astype(jnp.float32)
    ref2 = fire_reference(x2, params)
    err2 = float(jnp.max(jnp.abs(out2 - ref2)))
    assert jnp.allclose(out2, ref2, atol=2e-2, rtol=2e-2), err2

    print("KERNEL_OK")
</pallas_src>

<mosaic_0001>
module attributes {stable_mosaic.version = 11 : i64} {
  func.func @fire_kernel(%arg0: i32, %arg1: i32, %arg2: memref<1x16x128xbf16, #tpu.memory_space<vmem>>, %arg3: memref<1x16x128xbf16, #tpu.memory_space<vmem>>, %arg4: memref<1x16x128xbf16, #tpu.memory_space<vmem>>, %arg5: memref<128x128xbf16, #tpu.memory_space<vmem>>, %arg6: memref<1x128xf32, #tpu.memory_space<vmem>>, %arg7: memref<1x128xf32, #tpu.memory_space<vmem>>, %arg8: memref<128x512xbf16, #tpu.memory_space<vmem>>, %arg9: memref<1x128xf32, #tpu.memory_space<vmem>>, %arg10: memref<1x128xf32, #tpu.memory_space<vmem>>, %arg11: memref<1x128xf32, #tpu.memory_space<vmem>>, %arg12: memref<1x128xf32, #tpu.memory_space<vmem>>, %arg13: memref<1x16x256xbf16, #tpu.memory_space<vmem>>) attributes {dimension_semantics = [#tpu.dimension_semantics<parallel>, #tpu.dimension_semantics<parallel>], iteration_bounds = array<i64: 1, 2>, scalar_prefetch = 0 : i64, scratch_operands = 0 : i64, tpu.core_type = #tpu.core_type<tc>, window_params = [{transform_indices = @transform_0, window_bounds = array<i64: 1, 16, 128>}, {transform_indices = @transform_1, window_bounds = array<i64: 1, 16, 128>}, {transform_indices = @transform_2, window_bounds = array<i64: 1, 16, 128>}, {pipeline_mode = #tpu.pipeline_mode<synchronous>, transform_indices = @transform_3, window_bounds = array<i64: 128, 128>}, {pipeline_mode = #tpu.pipeline_mode<synchronous>, transform_indices = @transform_4, window_bounds = array<i64: 1, 128>}, {pipeline_mode = #tpu.pipeline_mode<synchronous>, transform_indices = @transform_5, window_bounds = array<i64: 1, 128>}, {pipeline_mode = #tpu.pipeline_mode<synchronous>, transform_indices = @transform_6, window_bounds = array<i64: 128, 512>}, {pipeline_mode = #tpu.pipeline_mode<synchronous>, transform_indices = @transform_7, window_bounds = array<i64: 1, 128>}, {pipeline_mode = #tpu.pipeline_mode<synchronous>, transform_indices = @transform_8, window_bounds = array<i64: 1, 128>}, {pipeline_mode = #tpu.pipeline_mode<synchronous>, transform_indices = @transform_9, window_bounds = array<i64: 1, 128>}, {pipeline_mode = #tpu.pipeline_mode<synchronous>, transform_indices = @transform_10, window_bounds = array<i64: 1, 128>}, {transform_indices = @transform_11, window_bounds = array<i64: 1, 16, 256>}]} {
    %c0 = arith.constant 0 : index
    %c0_0 = arith.constant 0 : index
    %0 = vector.load %arg5[%c0, %c0_0] : memref<128x128xbf16, #tpu.memory_space<vmem>>, vector<128x128xbf16>
    %c0_1 = arith.constant 0 : index
    %c0_2 = arith.constant 0 : index
    %1 = vector.load %arg6[%c0_1, %c0_2] : memref<1x128xf32, #tpu.memory_space<vmem>>, vector<1x128xf32>
    %c0_3 = arith.constant 0 : index
    %c0_4 = arith.constant 0 : index
    %2 = vector.load %arg7[%c0_3, %c0_4] : memref<1x128xf32, #tpu.memory_space<vmem>>, vector<1x128xf32>
    %c0_5 = arith.constant 0 : index
    %c0_6 = arith.constant 0 : index
    %c0_7 = arith.constant 0 : index
    %3 = vector.load %arg2[%c0_5, %c0_6, %c0_7] : memref<1x16x128xbf16, #tpu.memory_space<vmem>>, vector<1x16x128xbf16>
    %4 = vector.shape_cast %3 : vector<1x16x128xbf16> to vector<16x128xbf16>
    %cst = arith.constant dense<0.000000e+00> : vector<16x128xf32>
    %5 = tpu.matmul %4, %0, %cst {dimension_numbers = #tpu.dot_dimension_numbers<[1], [0], [0], [1], [0, 0, 1, 1], [], []>} : vector<16x128xbf16>, vector<128x128xbf16>, vector<16x128xf32> -> vector<16x128xf32>
    %6 = vector.broadcast %1 : vector<1x128xf32> to vector<16x128xf32>
    %7 = arith.mulf %5, %6 : vector<16x128xf32>
    %8 = vector.broadcast %2 : vector<1x128xf32> to vector<16x128xf32>
    %9 = arith.addf %7, %8 : vector<16x128xf32>
    %cst_8 = arith.constant 0.000000e+00 : f32
    %10 = vector.broadcast %cst_8 : f32 to vector<16x128xf32>
    %11 = arith.maximumf %9, %10 : vector<16x128xf32>
    %12 = arith.truncf %11 : vector<16x128xf32> to vector<16x128xbf16>
    %c0_9 = arith.constant 0 : index
    %c15 = arith.constant 15 : index
    %c0_10 = arith.constant 0 : index
    %13 = vector.load %arg3[%c0_9, %c15, %c0_10] : memref<1x16x128xbf16, #tpu.memory_space<vmem>>, vector<1x1x128xbf16>
    %14 = vector.shape_cast %13 : vector<1x1x128xbf16> to vector<1x128xbf16>
    %cst_11 = arith.constant dense<0.000000e+00> : vector<1x128xf32>
    %15 = tpu.matmul %14, %0, %cst_11 {dimension_numbers = #tpu.dot_dimension_numbers<[1], [0], [0], [1], [0, 0, 1, 1], [], []>} : vector<1x128xbf16>, vector<128x128xbf16>, vector<1x128xf32> -> vector<1x128xf32>
    %16 = arith.mulf %15, %1 : vector<1x128xf32>
    %17 = arith.addf %16, %2 : vector<1x128xf32>
    %cst_12 = arith.constant 0.000000e+00 : f32
    %18 = vector.broadcast %cst_12 : f32 to vector<1x128xf32>
    %19 = arith.maximumf %17, %18 : vector<1x128xf32>
    %20 = arith.truncf %19 : vector<1x128xf32> to vector<1x128xbf16>
    %c0_13 = arith.constant 0 : index
    %c0_14 = arith.constant 0 : index
    %c0_15 = arith.constant 0 : index
    %21 = vector.load %arg4[%c0_13, %c0_14, %c0_15] : memref<1x16x128xbf16, #tpu.memory_space<vmem>>, vector<1x1x128xbf16>
    %22 = vector.shape_cast %21 : vector<1x1x128xbf16> to vector<1x128xbf16>
    %cst_16 = arith.constant dense<0.000000e+00> : vector<1x128xf32>
    %23 = tpu.matmul %22, %0, %cst_16 {dimension_numbers = #tpu.dot_dimension_numbers<[1], [0], [0], [1], [0, 0, 1, 1], [], []>} : vector<1x128xbf16>, vector<128x128xbf16>, vector<1x128xf32> -> vector<1x128xf32>
    %24 = arith.mulf %23, %1 : vector<1x128xf32>
    %25 = arith.addf %24, %2 : vector<1x128xf32>
    %cst_17 = arith.constant 0.000000e+00 : f32
    %26 = vector.broadcast %cst_17 : f32 to vector<1x128xf32>
    %27 = arith.maximumf %25, %26 : vector<1x128xf32>
    %28 = arith.truncf %27 : vector<1x128xf32> to vector<1x128xbf16>
    %c0_18 = arith.constant 0 : index
    %c0_19 = arith.constant 0 : index
    %29 = vector.load %arg8[%c0_18, %c0_19] : memref<128x512xbf16, #tpu.memory_space<vmem>>, vector<128x512xbf16>
    %cst_20 = arith.constant dense<0.000000e+00> : vector<16x512xf32>
    %30 = tpu.matmul %12, %29, %cst_20 {dimension_numbers = #tpu.dot_dimension_numbers<[1], [0], [0], [1], [0, 0, 1, 1], [], []>} : vector<16x128xbf16>, vector<128x512xbf16>, vector<16x512xf32> -> vector<16x512xf32>
    %31 = vector.extract_strided_slice %30 {offsets = [0, 0], sizes = [16, 128], strides = [1, 1]} : vector<16x512xf32> to vector<16x128xf32>
    %32 = vector.extract_strided_slice %30 {offsets = [0, 128], sizes = [16, 128], strides = [1, 1]} : vector<16x512xf32> to vector<16x128xf32>
    %33 = vector.extract_strided_slice %30 {offsets = [0, 256], sizes = [16, 128], strides = [1, 1]} : vector<16x512xf32> to vector<16x128xf32>
    %34 = vector.extract_strided_slice %30 {offsets = [0, 384], sizes = [16, 128], strides = [1, 1]} : vector<16x512xf32> to vector<16x128xf32>
    %35 = vector.extract_strided_slice %29 {offsets = [0, 128], sizes = [128, 128], strides = [1, 1]} : vector<128x512xbf16> to vector<128x128xbf16>
    %36 = vector.extract_strided_slice %29 {offsets = [0, 384], sizes = [128, 128], strides = [1, 1]} : vector<128x512xbf16> to vector<128x128xbf16>
    %cst_21 = arith.constant dense<0.000000e+00> : vector<1x128xf32>
    %37 = tpu.matmul %20, %35, %cst_21 {dimension_numbers = #tpu.dot_dimension_numbers<[1], [0], [0], [1], [0, 0, 1, 1], [], []>} : vector<1x128xbf16>, vector<128x128xbf16>, vector<1x128xf32> -> vector<1x128xf32>
    %cst_22 = arith.constant dense<0.000000e+00> : vector<1x128xf32>
    %38 = tpu.matmul %28, %36, %cst_22 {dimension_numbers = #tpu.dot_dimension_numbers<[1], [0], [0], [1], [0, 0, 1, 1], [], []>} : vector<1x128xbf16>, vector<128x128xbf16>, vector<1x128xf32> -> vector<1x128xf32>
    %c0_i32 = arith.constant 0 : i32
    %39 = arith.cmpi sgt, %arg0, %c0_i32 : i32
    %cst_23 = arith.constant 0.000000e+00 : f32
    %40 = vector.broadcast %cst_23 : f32 to vector<1x128xf32>
    %41 = arith.select %39, %37, %40 : vector<1x128xf32>
    %c0_i32_24 = arith.constant 0 : i32
    %42 = arith.cmpi slt, %arg0, %c0_i32_24 : i32
    %cst_25 = arith.constant 0.000000e+00 : f32
    %43 = vector.broadcast %cst_25 : f32 to vector<1x128xf32>
    %44 = arith.select %42, %38, %43 : vector<1x128xf32>
    %45 = tpu.iota {dimensions = array<i32: 0>} : vector<16x1xi32>
    %c1_i32 = arith.constant 1 : i32
    %46 = tpu.dynamic_rotate %32 by %c1_i32 dim 0 : vector<16x128xf32>, i32 -> vector<16x128xf32>
    %c15_i32 = arith.constant 15 : i32
    %47 = tpu.dynamic_rotate %34 by %c15_i32 dim 0 : vector<16x128xf32>, i32 -> vector<16x128xf32>
    %c0_i32_26 = arith.constant 0 : i32
    %48 = vector.broadcast %c0_i32_26 : i32 to vector<16x1xi32>
    %49 = arith.cmpi eq, %45, %48 : vector<16x1xi32>
    %50 = vector.shape_cast %49 : vector<16x1xi1> to vector<16x1xi1>
    %51 = vector.broadcast %50 : vector<16x1xi1> to vector<16x128xi1>
    %52 = vector.shape_cast %41 : vector<1x128xf32> to vector<1x128xf32>
    %53 = vector.broadcast %52 : vector<1x128xf32> to vector<16x128xf32>
    %54 = arith.select %51, %53, %46 : vector<16x128xi1>, vector<16x128xf32>
    %55 = arith.addf %33, %54 : vector<16x128xf32>
    %c15_i32_27 = arith.constant 15 : i32
    %56 = vector.broadcast %c15_i32_27 : i32 to vector<16x1xi32>
    %57 = arith.cmpi eq, %45, %56 : vector<16x1xi32>
    %58 = vector.shape_cast %57 : vector<16x1xi1> to vector<16x1xi1>
    %59 = vector.broadcast %58 : vector<16x1xi1> to vector<16x128xi1>
    %60 = vector.shape_cast %44 : vector<1x128xf32> to vector<1x128xf32>
    %61 = vector.broadcast %60 : vector<1x128xf32> to vector<16x128xf32>
    %62 = arith.select %59, %61, %47 : vector<16x128xi1>, vector<16x128xf32>
    %63 = arith.addf %55, %62 : vector<16x128xf32>
    %c0_28 = arith.constant 0 : index
    %c0_29 = arith.constant 0 : index
    %64 = vector.load %arg9[%c0_28, %c0_29] : memref<1x128xf32, #tpu.memory_space<vmem>>, vector<1x128xf32>
    %65 = vector.broadcast %64 : vector<1x128xf32> to vector<16x128xf32>
    %66 = arith.mulf %31, %65 : vector<16x128xf32>
    %c0_30 = arith.constant 0 : index
    %c0_31 = arith.constant 0 : index
    %67 = vector.load %arg10[%c0_30, %c0_31] : memref<1x128xf32, #tpu.memory_space<vmem>>, vector<1x128xf32>
    %68 = vector.broadcast %67 : vector<1x128xf32> to vector<16x128xf32>
    %69 = arith.addf %66, %68 : vector<16x128xf32>
    %cst_32 = arith.constant 0.000000e+00 : f32
    %70 = vector.broadcast %cst_32 : f32 to vector<16x128xf32>
    %71 = arith.maximumf %69, %70 : vector<16x128xf32>
    %c0_33 = arith.constant 0 : index
    %c0_34 = arith.constant 0 : index
    %72 = vector.load %arg11[%c0_33, %c0_34] : memref<1x128xf32, #tpu.memory_space<vmem>>, vector<1x128xf32>
    %73 = vector.broadcast %72 : vector<1x128xf32> to vector<16x128xf32>
    %74 = arith.mulf %63, %73 : vector<16x128xf32>
    %c0_35 = arith.constant 0 : index
    %c0_36 = arith.constant 0 : index
    %75 = vector.load %arg12[%c0_35, %c0_36] : memref<1x128xf32, #tpu.memory_space<vmem>>, vector<1x128xf32>
    %76 = vector.broadcast %75 : vector<1x128xf32> to vector<16x128xf32>
    %77 = arith.addf %74, %76 : vector<16x128xf32>
    %cst_37 = arith.constant 0.000000e+00 : f32
    %78 = vector.broadcast %cst_37 : f32 to vector<16x128xf32>
    %79 = arith.maximumf %77, %78 : vector<16x128xf32>
    %80 = arith.truncf %71 : vector<16x128xf32> to vector<16x128xbf16>
    %c0_38 = arith.constant 0 : index
    %c0_39 = arith.constant 0 : index
    %c0_40 = arith.constant 0 : index
    %81 = vector.load %arg13[%c0_38, %c0_39, %c0_40] : memref<1x16x256xbf16, #tpu.memory_space<vmem>>, vector<1x16x128xbf16>
    %82 = vector.shape_cast %81 : vector<1x16x128xbf16> to vector<16x128xbf16>
    %83 = vector.shape_cast %80 : vector<16x128xbf16> to vector<1x16x128xbf16>
    tpu.vector_store %arg13[%c0_38, %c0_39, %c0_40], %83 {strides = array<i32>} : memref<1x16x256xbf16, #tpu.memory_space<vmem>>, vector<1x16x128xbf16>,
    %84 = arith.truncf %79 : vector<16x128xf32> to vector<16x128xbf16>
    %c0_41 = arith.constant 0 : index
    %c0_42 = arith.constant 0 : index
    %c128 = arith.constant 128 : index
    %85 = vector.load %arg13[%c0_41, %c0_42, %c128] : memref<1x16x256xbf16, #tpu.memory_space<vmem>>, vector<1x16x128xbf16>
    %86 = vector.shape_cast %85 : vector<1x16x128xbf16> to vector<16x128xbf16>
    %87 = vector.shape_cast %84 : vector<16x128xbf16> to vector<1x16x128xbf16>
    tpu.vector_store %arg13[%c0_41, %c0_42, %c128], %87 {strides = array<i32>} : memref<1x16x256xbf16, #tpu.memory_space<vmem>>, vector<1x16x128xbf16>,
    return
  }
  func.func @transform_0(%arg0: i32, %arg1: i32) -> (i32, i32, i32) {
    %c0_i32 = arith.constant 0 : i32
    %c0_i32_0 = arith.constant 0 : i32
    return %arg1, %arg0, %c0_i32 : i32, i32, i32
  }
  func.func @transform_1(%arg0: i32, %arg1: i32) -> (i32, i32, i32) {
    %c1_i32 = arith.constant 1 : i32
    %0 = arith.muli %arg0, %c1_i32 : i32
    %c1_i32_0 = arith.constant 1 : i32
    %1 = arith.subi %0, %c1_i32_0 : i32
    %c0_i32 = arith.constant 0 : i32
    %2 = arith.maxsi %1, %c0_i32 : i32
    %c0_i32_1 = arith.constant 0 : i32
    %c0_i32_2 = arith.constant 0 : i32
    return %arg1, %2, %c0_i32_1 : i32, i32, i32
  }
  func.func @transform_2(%arg0: i32, %arg1: i32) -> (i32, i32, i32) {
    %c1_i32 = arith.constant 1 : i32
    %0 = arith.addi %arg0, %c1_i32 : i32
    %c1_i32_0 = arith.constant 1 : i32
    %1 = arith.muli %0, %c1_i32_0 : i32
    %c0_i32 = arith.constant 0 : i32
    %2 = arith.minsi %1, %c0_i32 : i32
    %c0_i32_1 = arith.constant 0 : i32
    %c0_i32_2 = arith.constant 0 : i32
    return %arg1, %2, %c0_i32_1 : i32, i32, i32
  }
  func.func @transform_3(%arg0: i32, %arg1: i32) -> (i32, i32) {
    %c0_i32 = arith.constant 0 : i32
    %c0_i32_0 = arith.constant 0 : i32
    %c0_i32_1 = arith.constant 0 : i32
    return %c0_i32, %c0_i32_0 : i32, i32
  }
  func.func @transform_4(%arg0: i32, %arg1: i32) -> (i32, i32) {
    %c0_i32 = arith.constant 0 : i32
    %c0_i32_0 = arith.constant 0 : i32
    %c0_i32_1 = arith.constant 0 : i32
    return %c0_i32, %c0_i32_0 : i32, i32
  }
  func.func @transform_5(%arg0: i32, %arg1: i32) -> (i32, i32) {
    %c0_i32 = arith.constant 0 : i32
    %c0_i32_0 = arith.constant 0 : i32
    %c0_i32_1 = arith.constant 0 : i32
    return %c0_i32, %c0_i32_0 : i32, i32
  }
  func.func @transform_6(%arg0: i32, %arg1: i32) -> (i32, i32) {
    %c0_i32 = arith.constant 0 : i32
    %c0_i32_0 = arith.constant 0 : i32
    %c0_i32_1 = arith.constant 0 : i32
    return %c0_i32, %c0_i32_0 : i32, i32
  }
  func.func @transform_7(%arg0: i32, %arg1: i32) -> (i32, i32) {
    %c0_i32 = arith.constant 0 : i32
    %c0_i32_0 = arith.constant 0 : i32
    %c0_i32_1 = arith.constant 0 : i32
    return %c0_i32, %c0_i32_0 : i32, i32
  }
  func.func @transform_8(%arg0: i32, %arg1: i32) -> (i32, i32) {
    %c0_i32 = arith.constant 0 : i32
    %c0_i32_0 = arith.constant 0 : i32
    %c0_i32_1 = arith.constant 0 : i32
    return %c0_i32, %c0_i32_0 : i32, i32
  }
  func.func @transform_9(%arg0: i32, %arg1: i32) -> (i32, i32) {
    %c0_i32 = arith.constant 0 : i32
    %c0_i32_0 = arith.constant 0 : i32
    %c0_i32_1 = arith.constant 0 : i32
    return %c0_i32, %c0_i32_0 : i32, i32
  }
  func.func @transform_10(%arg0: i32, %arg1: i32) -> (i32, i32) {
    %c0_i32 = arith.constant 0 : i32
    %c0_i32_0 = arith.constant 0 : i32
    %c0_i32_1 = arith.constant 0 : i32
    return %c0_i32, %c0_i32_0 : i32, i32
  }
  func.func @transform_11(%arg0: i32, %arg1: i32) -> (i32, i32, i32) {
    %c0_i32 = arith.constant 0 : i32
    %c0_i32_0 = arith.constant 0 : i32
    return %arg1, %arg0, %c0_i32 : i32, i32, i32
  }
}

</mosaic_0001>

<llo_original>
// kernel: tpu_custom_call.1
$region0: #{tpu_custom_call.1}
  #allocation0 [shape = 'u32[]', space=smem, size = 0x4, offset = 0x4, fixed_abs, tag = 'smem constant byte address 0x4 - core index']
  #allocation1 [shape = 'u32[72,128]{1,0:T(1,128)}', space=vmem, size = 0x9000, scoped, tag = 'internal scratch']
  %s0 = inlined_call_operand.hbm [shape: bf16[2,16,128], index: 0, kind: input, shape index: {}]
  %s1 = inlined_call_operand.hbm [shape: bf16[2,16,128], index: 1, kind: input, shape index: {}]
  %s2 = inlined_call_operand.hbm [shape: bf16[2,16,128], index: 2, kind: input, shape index: {}]
  %s3 = inlined_call_operand.hbm [shape: bf16[128,128], index: 3, kind: input, shape index: {}]
  %s4 = inlined_call_operand.vmem [shape: f32[1,128], index: 4, kind: input, shape index: {}]
  %s5 = inlined_call_operand.vmem [shape: f32[1,128], index: 5, kind: input, shape index: {}]
  %s6 = inlined_call_operand.hbm [shape: bf16[128,512], index: 6, kind: input, shape index: {}]
  %s7 = inlined_call_operand.vmem [shape: f32[1,128], index: 7, kind: input, shape index: {}]
  %s8 = inlined_call_operand.vmem [shape: f32[1,128], index: 8, kind: input, shape index: {}]
  %s9 = inlined_call_operand.vmem [shape: f32[1,128], index: 9, kind: input, shape index: {}]
  %s10 = inlined_call_operand.vmem [shape: f32[1,128], index: 10, kind: input, shape index: {}]
  %s11 = inlined_call_operand.hbm [shape: bf16[2,16,256], index: 11, kind: output, shape index: {}]
  %s12 = sld [smem:[#allocation0]]
  $region97: #{tpu_custom_call.1} parent=0
    _
  %s14 = ssub.s32 1, %s12
  %s15 = scalar_select 0, %s14, %s12
  $region1: #{tpu_custom_call.1} parent=0
    #allocation2 [shape = 'u8[8192]{0}', space=vmem, size = 0x2000, scoped, tag = 'input window, operand 0']
    #allocation3 [shape = 's32[2]{0}', space=sflag, size = 0x8, scoped, tag = 'scoped memory for tpu_custom_call.1']
    #allocation4 [shape = 's32[2]{0}', space=sflag, size = 0x8, scoped, tag = 'scoped memory for tpu_custom_call.1']
    #allocation5 [shape = 'u8[8192]{0}', space=vmem, size = 0x2000, scoped, tag = 'input window, operand 1']
    #allocation6 [shape = 's32[2]{0}', space=sflag, size = 0x8, scoped, tag = 'scoped memory for tpu_custom_call.1']
    #allocation7 [shape = 'u8[8192]{0}', space=vmem, size = 0x2000, scoped, tag = 'input window, operand 2']
    #allocation8 [shape = 'u8[32768]{0}', space=vmem, size = 0x8000, scoped, tag = 'input window, operand 3, single buffered']
    #allocation9 [shape = 's32[1]{0}', space=sflag, size = 0x4, scoped, tag = 'scoped memory for tpu_custom_call.1']
    #allocation10 [shape = 'u8[131072]{0}', space=vmem, size = 0x20000, scoped, tag = 'input window, operand 6, single buffered']
    #allocation11 [shape = 'u8[16384]{0}', space=vmem, size = 0x4000, scoped, tag = 'output window, operand 0']
    %16 = vsyncpa [#allocation3], 0
    %s17 = scalar_lea.sflag [#allocation3], 1
    %18 = vsyncpa %s17, 0
    %19 = vsyncpa [#allocation6], 0
    %s20 = scalar_lea.sflag [#allocation6], 1
    %21 = vsyncpa %s20, 0
    %22 = vsyncpa [#allocation9], 0
    %23 = vsyncpa [#allocation4], 0
    %s24 = scalar_lea.sflag [#allocation4], 1
    %25 = vsyncpa %s24, 0
    loop: start=0, step=1, limit=4
    $region2: #{tpu_custom_call.1} parent=1 // loop_pre_header
      _
    $region3: #{tpu_custom_call.1} parent=1 // loop_header
      %s27 = sphi 0, %s31
      %p28 = scmp.ge.s32.totalorder %s27, 4
      %s34 = sphi 0, %s46
      %s35 = sphi 0, %s42
      %s36 = sphi 0, %s34
      %s37 = sphi 0, %s35
      %s38 = sphi 0, %s36
      %s39 = sphi 0, %s37
      %s51 = sphi 0, %s53
      %s54 = sphi 0, %s51
      %s55 = sphi 0, %s54
      %s71 = sphi 0, %s55
      %s85 = sphi 0, %s87
      %s88 = sphi 0, %s85
      %s89 = sphi 0, %s88
      %s105 = sphi 0, %s89
      %s119 = sphi 0, %s121
      %s122 = sphi 0, %s119
      %s123 = sphi 0, %s122
      %s139 = sphi 0, %s123
      %s143 = sphi 0, %s143
      %s145 = sphi 0, %s143
      %s146 = sphi 0, %s145
      %s160 = sphi 0, %s146
      %s164 = sphi 0, %s164
      %s166 = sphi 0, %s164
      %s167 = sphi 0, %s166
      %s181 = sphi 0, %s167
      %s185 = sphi 0, %s185
      %s187 = sphi 0, %s185
      %s188 = sphi 0, %s187
      %s202 = sphi 0, %s188
      %s206 = sphi 0, %s206
      %s208 = sphi 0, %s206
      %s209 = sphi 0, %s208
      %s223 = sphi 0, %s209
      %s227 = sphi 0, %s227
      %s229 = sphi 0, %s227
      %s230 = sphi 0, %s229
      %s244 = sphi 0, %s230
      %s248 = sphi 0, %s248
      %s250 = sphi 0, %s248
      %s251 = sphi 0, %s250
      %s265 = sphi 0, %s251
      %s269 = sphi 0, %s269
      %s271 = sphi 0, %s269
      %s272 = sphi 0, %s271
      %s286 = sphi 0, %s272
      %s290 = sphi 0, %s290
      %s292 = sphi 0, %s290
      %s293 = sphi 0, %s292
      %s307 = sphi 0, %s293
      %s315 = sphi 0, %s317
      %s318 = sphi 0, %s315
      %s319 = sphi 0, %s318
      %s335 = sphi 0, %s319
    $region4: #{tpu_custom_call.1} parent=1 // loop_header_branch
      %30 = sbr.rel (%p28) target = $region8
    $region5: #{tpu_custom_call.1} parent=1 // loop_body
      %s32 = ssub.s32 %s27, 1
      %s33 = ssub.s32 %s27, 2
      %s40 = sadd.s32 1, %s35
      %p41 = scmp.ge.s32.totalorder %s40, 2
      %s42 = scalar_select %p41, 0, %s40
      %s43 = sadd.s32 1, %s34
      %s44 = scalar_select %p41, %s43, %s34
      %p45 = scmp.ge.s32.totalorder %s44, 1
      %s46 = scalar_select %p45, 0, %s44
      %s47 = ssub.s32 %s35, %s42
      %s48 = ssub.s32 %s34, %s46
      %s49 = sor.u32 %s47, %s48
      %p50 = scmp.eq.s32.totalorder %s49, 0
      %s52 = sadd.s32 %s51, 1
      %s53 = scalar_select %p50, %s51, %s52
      %p56 = pneg %p50
      %p57 = scmp.eq.s32.totalorder %s27, 1
      %p58 = por %p56, %p57
      %p59 = scmp.ne.s32.totalorder %s51, %s54
      %p60 = scmp.eq.s32.totalorder %s27, 0
      %p61 = por %p59, %p60
      %p62 = scmp.ne.s32.totalorder %s51, %s54
      %p63 = scmp.eq.s32.totalorder %s32, 1
      %p64 = por %p62, %p63
      %p65 = scmp.ne.s32.totalorder %s54, %s55
      %p66 = scmp.eq.s32.totalorder %s32, 0
      %p67 = por %p65, %p66
      %p68 = scmp.ne.s32.totalorder %s54, %s55
      %p69 = scmp.eq.s32.totalorder %s33, 1
      %p70 = por %p68, %p69
      %p72 = scmp.ne.s32.totalorder %s55, %s71
      %p73 = scmp.eq.s32.totalorder %s33, 0
      %p74 = por %p72, %p73
      %s75 = ssub.s32 %s34, 1
      %p76 = scmp.gt.s32.totalorder %s75, 0
      %s77 = scalar_select %p76, %s75, 0
      %s78 = ssub.s32 %s46, 1
      %p79 = scmp.gt.s32.totalorder %s78, 0
      %s80 = scalar_select %p79, %s78, 0
      %s81 = ssub.s32 %s35, %s42
      %s82 = ssub.s32 %s77, %s80
      %s83 = sor.u32 %s81, %s82
      %p84 = scmp.eq.s32.totalorder %s83, 0
      %s86 = sadd.s32 %s85, 1
      %s87 = scalar_select %p84, %s85, %s86
      %p90 = pneg %p84
      %p91 = scmp.eq.s32.totalorder %s27, 1
      %p92 = por %p90, %p91
      %p93 = scmp.ne.s32.totalorder %s85, %s88
      %p94 = scmp.eq.s32.totalorder %s27, 0
      %p95 = por %p93, %p94
      %p96 = scmp.ne.s32.totalorder %s85, %s88
      %p97 = scmp.eq.s32.totalorder %s32, 1
      %p98 = por %p96, %p97
      %p99 = scmp.ne.s32.totalorder %s88, %s89
      %p100 = scmp.eq.s32.totalorder %s32, 0
      %p101 = por %p99, %p100
      %p102 = scmp.ne.s32.totalorder %s88, %s89
      %p103 = scmp.eq.s32.totalorder %s33, 1
      %p104 = por %p102, %p103
      %p106 = scmp.ne.s32.totalorder %s89, %s105
      %p107 = scmp.eq.s32.totalorder %s33, 0
      %p108 = por %p106, %p107
      %s109 = sadd.s32 %s34, 1
      %p110 = scmp.lt.s32.totalorder %s109, 0
      %s111 = scalar_select %p110, %s109, 0
      %s112 = sadd.s32 %s46, 1
      %p113 = scmp.lt.s32.totalorder %s112, 0
      %s114 = scalar_select %p113, %s112, 0
      %s115 = ssub.s32 %s35, %s42
      %s116 = ssub.s32 %s111, %s114
      %s117 = sor.u32 %s115, %s116
      %p118 = scmp.eq.s32.totalorder %s117, 0
      %s120 = sadd.s32 %s119, 1
      %s121 = scalar_select %p118, %s119, %s120
      %p124 = pneg %p118
      %p125 = scmp.eq.s32.totalorder %s27, 1
      %p126 = por %p124, %p125
      %p127 = scmp.ne.s32.totalorder %s119, %s122
      %p128 = scmp.eq.s32.totalorder %s27, 0
      %p129 = por %p127, %p128
      %p130 = scmp.ne.s32.totalorder %s119, %s122
      %p131 = scmp.eq.s32.totalorder %s32, 1
      %p132 = por %p130, %p131
      %p133 = scmp.ne.s32.totalorder %s122, %s123
      %p134 = scmp.eq.s32.totalorder %s32, 0
      %p135 = por %p133, %p134
      %p136 = scmp.ne.s32.totalorder %s122, %s123
      %p137 = scmp.eq.s32.totalorder %s33, 1
      %p138 = por %p136, %p137
      %p140 = scmp.ne.s32.totalorder %s123, %s139
      %p141 = scmp.eq.s32.totalorder %s33, 0
      %p142 = por %p140, %p141
      %s144 = sadd.s32 %s143, 1
      %p147 = scmp.eq.s32.totalorder %s27, 1
      %p148 = scmp.ne.s32.totalorder %s143, %s145
      %p149 = scmp.eq.s32.totalorder %s27, 0
      %p150 = por %p148, %p149
      %p151 = scmp.ne.s32.totalorder %s143, %s145
      %p152 = scmp.eq.s32.totalorder %s32, 1
      %p153 = por %p151, %p152
      %p154 = scmp.ne.s32.totalorder %s145, %s146
      %p155 = scmp.eq.s32.totalorder %s32, 0
      %p156 = por %p154, %p155
      %p157 = scmp.ne.s32.totalorder %s145, %s146
      %p158 = scmp.eq.s32.totalorder %s33, 1
      %p159 = por %p157, %p158
      %p161 = scmp.ne.s32.totalorder %s146, %s160
      %p162 = scmp.eq.s32.totalorder %s33, 0
      %p163 = por %p161, %p162
      %s165 = sadd.s32 %s164, 1
      %p168 = scmp.eq.s32.totalorder %s27, 1
      %p169 = scmp.ne.s32.totalorder %s164, %s166
      %p170 = scmp.eq.s32.totalorder %s27, 0
      %p171 = por %p169, %p170
      %p172 = scmp.ne.s32.totalorder %s164, %s166
      %p173 = scmp.eq.s32.totalorder %s32, 1
      %p174 = por %p172, %p173
      %p175 = scmp.ne.s32.totalorder %s166, %s167
      %p176 = scmp.eq.s32.totalorder %s32, 0
      %p177 = por %p175, %p176
      %p178 = scmp.ne.s32.totalorder %s166, %s167
      %p179 = scmp.eq.s32.totalorder %s33, 1
      %p180 = por %p178, %p179
      %p182 = scmp.ne.s32.totalorder %s167, %s181
      %p183 = scmp.eq.s32.totalorder %s33, 0
      %p184 = por %p182, %p183
      %s186 = sadd.s32 %s185, 1
      %p189 = scmp.eq.s32.totalorder %s27, 1
      %p190 = scmp.ne.s32.totalorder %s185, %s187
      %p191 = scmp.eq.s32.totalorder %s27, 0
      %p192 = por %p190, %p191
      %p193 = scmp.ne.s32.totalorder %s185, %s187
      %p194 = scmp.eq.s32.totalorder %s32, 1
      %p195 = por %p193, %p194
      %p196 = scmp.ne.s32.totalorder %s187, %s188
      %p197 = scmp.eq.s32.totalorder %s32, 0
      %p198 = por %p196, %p197
      %p199 = scmp.ne.s32.totalorder %s187, %s188
      %p200 = scmp.eq.s32.totalorder %s33, 1
      %p201 = por %p199, %p200
      %p203 = scmp.ne.s32.totalorder %s188, %s202
      %p204 = scmp.eq.s32.totalorder %s33, 0
      %p205 = por %p203, %p204
      %s207 = sadd.s32 %s206, 1
      %p210 = scmp.eq.s32.totalorder %s27, 1
      %p211 = scmp.ne.s32.totalorder %s206, %s208
      %p212 = scmp.eq.s32.totalorder %s27, 0
      %p213 = por %p211, %p212
      %p214 = scmp.ne.s32.totalorder %s206, %s208
      %p215 = scmp.eq.s32.totalorder %s32, 1
      %p216 = por %p214, %p215
      %p217 = scmp.ne.s32.totalorder %s208, %s209
      %p218 = scmp.eq.s32.totalorder %s32, 0
      %p219 = por %p217, %p218
      %p220 = scmp.ne.s32.totalorder %s208, %s209
      %p221 = scmp.eq.s32.totalorder %s33, 1
      %p222 = por %p220, %p221
      %p224 = scmp.ne.s32.totalorder %s209, %s223
      %p225 = scmp.eq.s32.totalorder %s33, 0
      %p226 = por %p224, %p225
      %s228 = sadd.s32 %s227, 1
      %p231 = scmp.eq.s32.totalorder %s27, 1
      %p232 = scmp.ne.s32.totalorder %s227, %s229
      %p233 = scmp.eq.s32.totalorder %s27, 0
      %p234 = por %p232, %p233
      %p235 = scmp.ne.s32.totalorder %s227, %s229
      %p236 = scmp.eq.s32.totalorder %s32, 1
      %p237 = por %p235, %p236
      %p238 = scmp.ne.s32.totalorder %s229, %s230
      %p239 = scmp.eq.s32.totalorder %s32, 0
      %p240 = por %p238, %p239
      %p241 = scmp.ne.s32.totalorder %s229, %s230
      %p242 = scmp.eq.s32.totalorder %s33, 1
      %p243 = por %p241, %p242
      %p245 = scmp.ne.s32.totalorder %s230, %s244
      %p246 = scmp.eq.s32.totalorder %s33, 0
      %p247 = por %p245, %p246
      %s249 = sadd.s32 %s248, 1
      %p252 = scmp.eq.s32.totalorder %s27, 1
      %p253 = scmp.ne.s32.totalorder %s248, %s250
      %p254 = scmp.eq.s32.totalorder %s27, 0
      %p255 = por %p253, %p254
      %p256 = scmp.ne.s32.totalorder %s248, %s250
      %p257 = scmp.eq.s32.totalorder %s32, 1
      %p258 = por %p256, %p257
      %p259 = scmp.ne.s32.totalorder %s250, %s251
      %p260 = scmp.eq.s32.totalorder %s32, 0
      %p261 = por %p259, %p260
      %p262 = scmp.ne.s32.totalorder %s250, %s251
      %p263 = scmp.eq.s32.totalorder %s33, 1
      %p264 = por %p262, %p263
      %p266 = scmp.ne.s32.totalorder %s251, %s265
      %p267 = scmp.eq.s32.totalorder %s33, 0
      %p268 = por %p266, %p267
      %s270 = sadd.s32 %s269, 1
      %p273 = scmp.eq.s32.totalorder %s27, 1
      %p274 = scmp.ne.s32.totalorder %s269, %s271
      %p275 = scmp.eq.s32.totalorder %s27, 0
      %p276 = por %p274, %p275
      %p277 = scmp.ne.s32.totalorder %s269, %s271
      %p278 = scmp.eq.s32.totalorder %s32, 1
      %p279 = por %p277, %p278
      %p280 = scmp.ne.s32.totalorder %s271, %s272
      %p281 = scmp.eq.s32.totalorder %s32, 0
      %p282 = por %p280, %p281
      %p283 = scmp.ne.s32.totalorder %s271, %s272
      %p284 = scmp.eq.s32.totalorder %s33, 1
      %p285 = por %p283, %p284
      %p287 = scmp.ne.s32.totalorder %s272, %s286
      %p288 = scmp.eq.s32.totalorder %s33, 0
      %p289 = por %p287, %p288
      %s291 = sadd.s32 %s290, 1
      %p294 = scmp.eq.s32.totalorder %s27, 1
      %p295 = scmp.ne.s32.totalorder %s290, %s292
      %p296 = scmp.eq.s32.totalorder %s27, 0
      %p297 = por %p295, %p296
      %p298 = scmp.ne.s32.totalorder %s290, %s292
      %p299 = scmp.eq.s32.totalorder %s32, 1
      %p300 = por %p298, %p299
      %p301 = scmp.ne.s32.totalorder %s292, %s293
      %p302 = scmp.eq.s32.totalorder %s32, 0
      %p303 = por %p301, %p302
      %p304 = scmp.ne.s32.totalorder %s292, %s293
      %p305 = scmp.eq.s32.totalorder %s33, 1
      %p306 = por %p304, %p305
      %p308 = scmp.ne.s32.totalorder %s293, %s307
      %p309 = scmp.eq.s32.totalorder %s33, 0
      %p310 = por %p308, %p309
      %s311 = ssub.s32 %s35, %s42
      %s312 = ssub.s32 %s34, %s46
      %s313 = sor.u32 %s311, %s312
      %p314 = scmp.eq.s32.totalorder %s313, 0
      %s316 = sadd.s32 %s315, 1
      %s317 = scalar_select %p314, %s315, %s316
      %p320 = pneg %p314
      %p321 = scmp.eq.s32.totalorder %s27, 1
      %p322 = por %p320, %p321
      %p323 = scmp.ne.s32.totalorder %s315, %s318
      %p324 = scmp.eq.s32.totalorder %s27, 0
      %p325 = por %p323, %p324
      %p326 = scmp.ne.s32.totalorder %s315, %s318
      %p327 = scmp.eq.s32.totalorder %s32, 1
      %p328 = por %p326, %p327
      %p329 = scmp.ne.s32.totalorder %s318, %s319
      %p330 = scmp.eq.s32.totalorder %s32, 0
      %p331 = por %p329, %p330
      %p332 = scmp.ne.s32.totalorder %s318, %s319
      %p333 = scmp.eq.s32.totalorder %s33, 1
      %p334 = por %p332, %p333
      %p336 = scmp.ne.s32.totalorder %s319, %s335
      %p337 = scmp.eq.s32.totalorder %s33, 0
      %p338 = por %p336, %p337
      %p339 = scmp.le.s32.totalorder 1, %s27
      %p340 = scmp.lt.s32.totalorder %s27, 3
      %p341 = pnand %p339, %p340
      %p342 = pneg %p341
      // Predicated region
      $region9: #{tpu_custom_call.1} parent=5 // pred_check
        _
      $region10: #{tpu_custom_call.1} parent=5 // pred_check_branch
        %344 = sbr.rel (%p341) target = $region12
      $region11: #{tpu_custom_call.1} parent=5 // pred_region
        %s345 = ssub.s32 %s27, 1
        // Predicated region
        $region13: #{tpu_custom_call.1} parent=11 // pred_check
          %p346 = pneg %p156
        $region14: #{tpu_custom_call.1} parent=11 // pred_check_branch
          %348 = sbr.rel (%p346) target = $region16
        $region15: #{tpu_custom_call.1} parent=11 // pred_region
          %350 = vsyncadd [#allocation9], 0
          %s351 = sshll.u32 %s3, 4
          %s352 = int_to_ptr.hbm [resolvable:$true] %s351
          %s353 = sshll.u32 [#allocation8], 4
          %s354 = int_to_ptr.vmem [resolvable:$true] %s353
          %359 = dma.hbm_to_vmem [thread:$0]  %s352, 1024, %s354, [#allocation9], 64, 64, 4
        $region16: #{tpu_custom_call.1} parent=11 // pred_fallthru
          _
        // Predicated region
        $region17: #{tpu_custom_call.1} parent=11 // pred_check
          %p360 = pneg %p177
        $region18: #{tpu_custom_call.1} parent=11 // pred_check_branch
          %362 = sbr.rel (%p360) target = $region20
        $region19: #{tpu_custom_call.1} parent=11 // pred_region
          _
        $region20: #{tpu_custom_call.1} parent=11 // pred_fallthru
          _
        // Predicated region
        $region21: #{tpu_custom_call.1} parent=11 // pred_check
          %p363 = pneg %p198
        $region22: #{tpu_custom_call.1} parent=11 // pred_check_branch
          %365 = sbr.rel (%p363) target = $region24
        $region23: #{tpu_custom_call.1} parent=11 // pred_region
          _
        $region24: #{tpu_custom_call.1} parent=11 // pred_fallthru
          _
        // Predicated region
        $region25: #{tpu_custom_call.1} parent=11 // pred_check
          %p366 = pneg %p219
        $region26: #{tpu_custom_call.1} parent=11 // pred_check_branch
          %368 = sbr.rel (%p366) target = $region28
        $region27: #{tpu_custom_call.1} parent=11 // pred_region
          %370 = vsyncadd [#allocation9], 0
          %s371 = sshll.u32 %s6, 4
          %s372 = int_to_ptr.hbm [resolvable:$true] %s371
          %s373 = sshll.u32 [#allocation10], 4
          %s374 = int_to_ptr.vmem [resolvable:$true] %s373
          %379 = dma.hbm_to_vmem [thread:$0]  %s372, 4096, %s374, [#allocation9], 256, 256, 16
        $region28: #{tpu_custom_call.1} parent=11 // pred_fallthru
          _
        // Predicated region
        $region29: #{tpu_custom_call.1} parent=11 // pred_check
          %p380 = pneg %p240
        $region30: #{tpu_custom_call.1} parent=11 // pred_check_branch
          %382 = sbr.rel (%p380) target = $region32
        $region31: #{tpu_custom_call.1} parent=11 // pred_region
          _
        $region32: #{tpu_custom_call.1} parent=11 // pred_fallthru
          _
        // Predicated region
        $region33: #{tpu_custom_call.1} parent=11 // pred_check
          %p383 = pneg %p261
        $region34: #{tpu_custom_call.1} parent=11 // pred_check_branch
          %385 = sbr.rel (%p383) target = $region36
        $region35: #{tpu_custom_call.1} parent=11 // pred_region
          _
        $region36: #{tpu_custom_call.1} parent=11 // pred_fallthru
          _
        // Predicated region
        $region37: #{tpu_custom_call.1} parent=11 // pred_check
          %p386 = pneg %p282
        $region38: #{tpu_custom_call.1} parent=11 // pred_check_branch
          %388 = sbr.rel (%p386) target = $region40
        $region39: #{tpu_custom_call.1} parent=11 // pred_region
          _
        $region40: #{tpu_custom_call.1} parent=11 // pred_fallthru
          _
        // Predicated region
        $region41: #{tpu_custom_call.1} parent=11 // pred_check
          %p389 = pneg %p303
        $region42: #{tpu_custom_call.1} parent=11 // pred_check_branch
          %391 = sbr.rel (%p389) target = $region44
        $region43: #{tpu_custom_call.1} parent=11 // pred_region
          _
        $region44: #{tpu_custom_call.1} parent=11 // pred_fallthru
          _
      $region12: #{tpu_custom_call.1} parent=5 // pred_fallthru
        _
      %p392 = scmp.lt.s32.totalorder %s27, 2
      // Predicated region
      $region45: #{tpu_custom_call.1} parent=5 // pred_check
        %p393 = pneg %p392
      $region46: #{tpu_custom_call.1} parent=5 // pred_check_branch
        %395 = sbr.rel (%p393) target = $region48
      $region47: #{tpu_custom_call.1} parent=5 // pred_region
        // Predicated region
        $region49: #{tpu_custom_call.1} parent=47 // pred_check
          %p396 = pneg %p61
        $region50: #{tpu_custom_call.1} parent=47 // pred_check_branch
          %398 = sbr.rel (%p396) target = $region52
        $region51: #{tpu_custom_call.1} parent=47 // pred_region
          %s399 = sand.u32 %s51, 1
          %s400 = scalar_lea.sflag [#allocation3], %s399
          %s401 = sand.u32 %s51, 1
          %s402 = smul.addr %s401, 8
          %s403 = scalar_lea.vmem [#allocation2], %s402
          %s404 = smul.u32 2, %s34
          %406 = vsyncadd %s400, 0
          %s407 = smul.addr %s35, 2
          %s408 = sadd.s32 %s404, %s407
          %s409 = smul.addr %s408, 4
          %s410 = scalar_lea.hbm %s0, %s409
          %s411 = sshll.u32 %s410, 4
          %s412 = int_to_ptr.hbm [resolvable:$true] %s411
          %s413 = sshll.u32 %s403, 4
          %s414 = int_to_ptr.vmem [resolvable:$true] %s413
          %419 = dma.hbm_to_vmem [thread:$0]  %s412, 128, %s414, %s400, 64, 64, 4
        $region52: #{tpu_custom_call.1} parent=47 // pred_fallthru
          _
        // Predicated region
        $region53: #{tpu_custom_call.1} parent=47 // pred_check
          %p420 = pneg %p95
        $region54: #{tpu_custom_call.1} parent=47 // pred_check_branch
          %422 = sbr.rel (%p420) target = $region56
        $region55: #{tpu_custom_call.1} parent=47 // pred_region
          %s423 = sand.u32 %s27, 1
          %s424 = scalar_lea.sflag [#allocation6], %s423
          %s425 = sand.u32 %s85, 1
          %s426 = smul.addr %s425, 8
          %s427 = scalar_lea.vmem [#allocation5], %s426
          %s428 = ssub.s32 %s34, 1
          %p429 = scmp.gt.s32.totalorder %s428, 0
          %s430 = scalar_select %p429, %s428, 0
          %s431 = smul.u32 2, %s430
          %433 = vsyncadd %s424, 0
          %s434 = smul.addr %s35, 2
          %s435 = sadd.s32 %s431, %s434
          %s436 = smul.addr %s435, 4
          %s437 = scalar_lea.hbm %s1, %s436
          %s438 = sshll.u32 %s437, 4
          %s439 = int_to_ptr.hbm [resolvable:$true] %s438
          %s440 = sshll.u32 %s427, 4
          %s441 = int_to_ptr.vmem [resolvable:$true] %s440
          %446 = dma.hbm_to_vmem [thread:$0]  %s439, 128, %s441, %s424, 64, 64, 4
        $region56: #{tpu_custom_call.1} parent=47 // pred_fallthru
          _
        // Predicated region
        $region57: #{tpu_custom_call.1} parent=47 // pred_check
          %p447 = pneg %p129
        $region58: #{tpu_custom_call.1} parent=47 // pred_check_branch
          %449 = sbr.rel (%p447) target = $region60
        $region59: #{tpu_custom_call.1} parent=47 // pred_region
          %s450 = sand.u32 %s27, 1
          %s451 = scalar_lea.sflag [#allocation6], %s450
          %s452 = sand.u32 %s119, 1
          %s453 = smul.addr %s452, 8
          %s454 = scalar_lea.vmem [#allocation7], %s453
          %s455 = sadd.s32 %s34, 1
          %p456 = scmp.lt.s32.totalorder %s455, 0
          %s457 = scalar_select %p456, %s455, 0
          %s458 = smul.u32 2, %s457
          %460 = vsyncadd %s451, 0
          %s461 = smul.addr %s35, 2
          %s462 = sadd.s32 %s458, %s461
          %s463 = smul.addr %s462, 4
          %s464 = scalar_lea.hbm %s2, %s463
          %s465 = sshll.u32 %s464, 4
          %s466 = int_to_ptr.hbm [resolvable:$true] %s465
          %s467 = sshll.u32 %s454, 4
          %s468 = int_to_ptr.vmem [resolvable:$true] %s467
          %473 = dma.hbm_to_vmem [thread:$0]  %s466, 128, %s468, %s451, 64, 64, 4
        $region60: #{tpu_custom_call.1} parent=47 // pred_fallthru
          _
      $region48: #{tpu_custom_call.1} parent=5 // pred_fallthru
        _
      %p474 = scmp.le.s32.totalorder 1, %s27
      %p475 = scmp.lt.s32.totalorder %s27, 3
      %p476 = pnand %p474, %p475
      %p477 = pneg %p476
      // Predicated region
      $region61: #{tpu_custom_call.1} parent=5 // pred_check
        _
      $region62: #{tpu_custom_call.1} parent=5 // pred_check_branch
        %479 = sbr.rel (%p476) target = $region64
      $region63: #{tpu_custom_call.1} parent=5 // pred_region
        %s480 = ssub.s32 %s27, 1
        %s481 = sand.u32 %s54, 1
        %s482 = scalar_lea.sflag [#allocation3], %s481
        %s483 = sand.u32 %s54, 1
        %s484 = smul.addr %s483, 8
        %s485 = scalar_lea.vmem [#allocation2], %s484
        // Predicated region
        $region65: #{tpu_custom_call.1} parent=63 // pred_check
          %p486 = pneg %p67
        $region66: #{tpu_custom_call.1} parent=63 // pred_check_branch
          %488 = sbr.rel (%p486) target = $region68
        $region67: #{tpu_custom_call.1} parent=63 // pred_region
          %490 = dma.done %s482, 128
        $region68: #{tpu_custom_call.1} parent=63 // pred_fallthru
          _
        %s491 = sand.u32 %s32, 1
        %s492 = scalar_lea.sflag [#allocation6], %s491
        %s493 = sand.u32 %s88, 1
        %s494 = smul.addr %s493, 8
        %s495 = scalar_lea.vmem [#allocation5], %s494
        // Predicated region
        $region69: #{tpu_custom_call.1} parent=63 // pred_check
          %p496 = pneg %p101
        $region70: #{tpu_custom_call.1} parent=63 // pred_check_branch
          %498 = sbr.rel (%p496) target = $region72
        $region71: #{tpu_custom_call.1} parent=63 // pred_region
          %500 = dma.done %s492, 128
        $region72: #{tpu_custom_call.1} parent=63 // pred_fallthru
          _
        %s501 = sand.u32 %s32, 1
        %s502 = scalar_lea.sflag [#allocation6], %s501
        %s503 = sand.u32 %s122, 1
        %s504 = smul.addr %s503, 8
        %s505 = scalar_lea.vmem [#allocation7], %s504
        // Predicated region
        $region73: #{tpu_custom_call.1} parent=63 // pred_check
          %p506 = pneg %p135
        $region74: #{tpu_custom_call.1} parent=63 // pred_check_branch
          %508 = sbr.rel (%p506) target = $region76
        $region75: #{tpu_custom_call.1} parent=63 // pred_region
          %510 = dma.done %s502, 128
        $region76: #{tpu_custom_call.1} parent=63 // pred_fallthru
          _
        // Predicated region
        $region77: #{tpu_custom_call.1} parent=63 // pred_check
          %p511 = pneg %p156
        $region78: #{tpu_custom_call.1} parent=63 // pred_check_branch
          %513 = sbr.rel (%p511) target = $region80
        $region79: #{tpu_custom_call.1} parent=63 // pred_region
          %515 = dma.done [#allocation9], 1024
        $region80: #{tpu_custom_call.1} parent=63 // pred_fallthru
          _
        // Predicated region
        $region81: #{tpu_custom_call.1} parent=63 // pred_check
          %p516 = pneg %p219
        $region82: #{tpu_custom_call.1} parent=63 // pred_check_branch
          %518 = sbr.rel (%p516) target = $region84
        $region83: #{tpu_custom_call.1} parent=63 // pred_region
          %520 = dma.done [#allocation9], 4096
        $region84: #{tpu_custom_call.1} parent=63 // pred_fallthru
          _
        %s521 = sand.u32 %s54, 1
        %s522 = scalar_lea.sflag [#allocation3], %s521
        %s523 = sand.u32 %s54, 1
        %s524 = smul.addr %s523, 8
        %s525 = scalar_lea.vmem [#allocation2], %s524
        %p526 = pneg %p67
        %p527 = pneg %p64
        %s528 = sand.u32 %s32, 1
        %s529 = scalar_lea.sflag [#allocation6], %s528
        %s530 = sand.u32 %s88, 1
        %s531 = smul.addr %s530, 8
        %s532 = scalar_lea.vmem [#allocation5], %s531
        %p533 = pneg %p101
        %p534 = pneg %p98
        %s535 = sand.u32 %s32, 1
        %s536 = scalar_lea.sflag [#allocation6], %s535
        %s537 = sand.u32 %s122, 1
        %s538 = smul.addr %s537, 8
        %s539 = scalar_lea.vmem [#allocation7], %s538
        %p540 = pneg %p135
        %p541 = pneg %p132
        %p542 = pneg %p156
        %p543 = pneg %p153
        %p544 = pneg %p177
        %p545 = pneg %p174
        %p546 = pneg %p198
        %p547 = pneg %p195
        %p548 = pneg %p219
        %p549 = pneg %p216
        %p550 = pneg %p240
        %p551 = pneg %p237
        %p552 = pneg %p261
        %p553 = pneg %p258
        %p554 = pneg %p282
        %p555 = pneg %p279
        %p556 = pneg %p303
        %p557 = pneg %p300
        %p558 = pneg %p331
        %p559 = pneg %p328
        %s560 = sand.u32 %s318, 1
        %s561 = scalar_lea.sflag [#allocation4], %s560
        %s562 = sand.u32 %s318, 1
        %s563 = smul.addr %s562, 16
        %s564 = scalar_lea.vmem [#allocation11], %s563
        %s565 = smul.u32 2, %s36
        %s566 = ssub.s32 %s36, 1
        %p567 = scmp.gt.s32.totalorder %s566, 0
        %s568 = scalar_select %p567, %s566, 0
        %s569 = smul.u32 2, %s568
        %s570 = sadd.s32 %s36, 1
        %p571 = scmp.lt.s32.totalorder %s570, 0
        %s572 = scalar_select %p571, %s570, 0
        %s573 = smul.u32 2, %s572
        %s574 = smul.u32 2, %s36
        %v575 = vld [vmem:[#allocation8] sm:$0xf]
        %v576 = vld [vmem:[#allocation8 + $0x4] sm:$0xf]
        %v577 = vld [vmem:[#allocation8 + $0x8] sm:$0xf]
        %v578 = vld [vmem:[#allocation8 + $0xc] sm:$0xf]
        %v579 = vld [vmem:[#allocation8 + $0x10] sm:$0xf]
        %v580 = vld [vmem:[#allocation8 + $0x14] sm:$0xf]
        %v581 = vld [vmem:[#allocation8 + $0x18] sm:$0xf]
        %v582 = vld [vmem:[#allocation8 + $0x1c] sm:$0xf]
        %v583 = vld [vmem:[#allocation8 + $0x20] sm:$0xf]
        %v584 = vld [vmem:[#allocation8 + $0x24] sm:$0xf]
        %v585 = vld [vmem:[#allocation8 + $0x28] sm:$0xf]
        %v586 = vld [vmem:[#allocation8 + $0x2c] sm:$0xf]
        %v587 = vld [vmem:[#allocation8 + $0x30] sm:$0xf]
        %v588 = vld [vmem:[#allocation8 + $0x34] sm:$0xf]
        %v589 = vld [vmem:[#allocation8 + $0x38] sm:$0xf]
        %v590 = vld [vmem:[#allocation8 + $0x3c] sm:$0xf]
        %v591 = vld [vmem:[%s4] sm:$0x1]
        %v592 = vld [vmem:[%s5] sm:$0x1]
        %v593 = vld [vmem:[%s485] sm:$0xf]
        %v594 = vld [vmem:[%s485 + $0x4] sm:$0xf]
        %v597 = vunpack.c.l.b16 %v593
        %v598 = vunpack.c.l.b16 %v594
        %v599 = vpack.c.b16 %v598, %v597
        %v617 = vunpack.c.l.b16 %v575
        %v618 = vunpack.c.l.b16 %v576
        %v619 = vunpack.c.l.b16 %v577
        %v620 = vunpack.c.l.b16 %v578
        %v621 = vunpack.c.l.b16 %v579
        %v622 = vunpack.c.l.b16 %v580
        %v623 = vunpack.c.l.b16 %v581
        %v624 = vunpack.c.l.b16 %v582
        %v625 = vunpack.c.l.b16 %v583
        %v626 = vunpack.c.l.b16 %v584
        %v627 = vunpack.c.l.b16 %v585
        %v628 = vunpack.c.l.b16 %v586
        %v629 = vunpack.c.l.b16 %v587
        %v630 = vunpack.c.l.b16 %v588
        %v631 = vunpack.c.l.b16 %v589
        %v632 = vunpack.c.l.b16 %v590
        %v633 = vpack.c.b16 %v618, %v617
        %v634 = vpack.c.b16 %v620, %v619
        %v635 = vpack.c.b16 %v622, %v621
        %v636 = vpack.c.b16 %v624, %v623
        %v637 = vpack.c.b16 %v626, %v625
        %v638 = vpack.c.b16 %v628, %v627
        %v639 = vpack.c.b16 %v630, %v629
        %v640 = vpack.c.b16 %v632, %v631
        %649 = vmatpush.bf16.msra.mxu0 %v640
        %650 = vmatpush.bf16.msra.mxu0 %v639
        %651 = vmatpush.bf16.msra.mxu0 %v638
        %652 = vmatpush.bf16.msra.mxu0 %v637
        %653 = vmatpush.bf16.msra.mxu0 %v636
        %654 = vmatpush.bf16.msra.mxu0 %v635
        %655 = vmatpush.bf16.msra.mxu0 %v634
        %656 = vmatpush.bf16.msra.mxu0 %v633
        %657 = vmatmul.bf16.gmra.mxu0 %v599
        %v658 = vpop.f32.mrf.mxu0
        %v659 = vadd.f32 0.0, %v658
        %v660 = vpop.f32.mrf.mxu0
        %v661 = vadd.f32 0.0, %v660
        %662 = vdwg.mxu0
        %v664 = vperm.slane %v591, 0
        %v666 = vmul.f32 %v659, %v664
        %v667 = vmul.f32 %v661, %v664
        %v669 = vperm.slane %v592, 0
        %v671 = vadd.f32 %v666, %v669
        %v672 = vadd.f32 %v667, %v669
        %v673 = vmax.f32 %v671, 0.0
        %v674 = vmax.f32 %v672, 0.0
        %v675 = vpack.c.bf16 %v674, %v673
        %v676 = vld [vmem:[%s495 + $0x4] sm:$0x8]
        %v678 = vunpack.c.l.b16 %v676
        %v679 = vpack.c.b16 %v678, %v678
        %v681 = vshrl.u32 %v679, 16
        %v683 = vrot.slane %v681, 3
        %685 = vmatpush.bf16.msra.mxu0 %v640
        %686 = vmatpush.bf16.msra.mxu0 %v639
        %687 = vmatpush.bf16.msra.mxu0 %v638
        %688 = vmatpush.bf16.msra.mxu0 %v637
        %689 = vmatpush.bf16.msra.mxu0 %v636
        %690 = vmatpush.bf16.msra.mxu0 %v635
        %691 = vmatpush.bf16.msra.mxu0 %v634
        %692 = vmatpush.bf16.msra.mxu0 %v633
        %693 = vmatmul.bf16.gmra.mxu0 %v683
        %v694 = vpop.f32.mrf.mxu0
        %v695 = vadd.f32 0.0, %v694
        %v696 = vpop.f32.mrf.mxu0
        %697 = vdwg.mxu0
        %v698 = vmul.f32 %v695, %v591
        %v699 = vadd.f32 %v698, %v592
        %v700 = vmax.f32 %v699, 0.0
        %v701 = vpack.c.bf16 %v700, %v700
        %v702 = vld [vmem:[%s505] sm:$0x1]
        %703 = vmatpush.bf16.msra.mxu0 %v640
        %704 = vmatpush.bf16.msra.mxu0 %v639
        %705 = vmatpush.bf16.msra.mxu0 %v638
        %706 = vmatpush.bf16.msra.mxu0 %v637
        %707 = vmatpush.bf16.msra.mxu0 %v636
        %708 = vmatpush.bf16.msra.mxu0 %v635
        %709 = vmatpush.bf16.msra.mxu0 %v634
        %710 = vmatpush.bf16.msra.mxu0 %v633
        %711 = vmatmul.bf16.gmra.mxu0 %v702
        %v712 = vpop.f32.mrf.mxu0
        %v713 = vadd.f32 0.0, %v712
        %v714 = vpop.f32.mrf.mxu0
        %715 = vdwg.mxu0
        %v716 = vmul.f32 %v713, %v591
        %v717 = vadd.f32 %v716, %v592
        %v718 = vmax.f32 %v717, 0.0
        %v719 = vpack.c.bf16 %v718, %v718
        %v720 = vld [vmem:[#allocation10] sm:$0xff]
        %v721 = vld [vmem:[#allocation10 + $0x8] sm:$0xff]
        %v722 = vld [vmem:[#allocation10 + $0x10] sm:$0xff]
        %v723 = vld [vmem:[#allocation10 + $0x18] sm:$0xff]
        %v724 = vld [vmem:[#allocation10 + $0x20] sm:$0xff]
        %v725 = vld [vmem:[#allocation10 + $0x28] sm:$0xff]
        %v726 = vld [vmem:[#allocation10 + $0x30] sm:$0xff]
        %v727 = vld [vmem:[#allocation10 + $0x38] sm:$0xff]
        %v728 = vld [vmem:[#allocation10 + $0x40] sm:$0xff]
        %v729 = vld [vmem:[#allocation10 + $0x48] sm:$0xff]
        %v730 = vld [vmem:[#allocation10 + $0x50] sm:$0xff]
        %v731 = vld [vmem:[#allocation10 + $0x58] sm:$0xff]
        %v732 = vld [vmem:[#allocation10 + $0x60] sm:$0xff]
        %v733 = vld [vmem:[#allocation10 + $0x68] sm:$0xff]
        %v734 = vld [vmem:[#allocation10 + $0x70] sm:$0xff]
        %v735 = vld [vmem:[#allocation10 + $0x78] sm:$0xff]
        %v736 = vld [vmem:[#allocation10 + $0x80] sm:$0xff]
        %v737 = vld [vmem:[#allocation10 + $0x88] sm:$0xff]
        %v738 = vld [vmem:[#allocation10 + $0x90] sm:$0xff]
        %v739 = vld [vmem:[#allocation10 + $0x98] sm:$0xff]
        %v740 = vld [vmem:[#allocation10 + $0xa0] sm:$0xff]
        %v741 = vld [vmem:[#allocation10 + $0xa8] sm:$0xff]
        %v742 = vld [vmem:[#allocation10 + $0xb0] sm:$0xff]
        %v743 = vld [vmem:[#allocation10 + $0xb8] sm:$0xff]
        %v744 = vld [vmem:[#allocation10 + $0xc0] sm:$0xff]
        %v745 = vld [vmem:[#allocation10 + $0xc8] sm:$0xff]
        %v746 = vld [vmem:[#allocation10 + $0xd0] sm:$0xff]
        %v747 = vld [vmem:[#allocation10 + $0xd8] sm:$0xff]
        %v748 = vld [vmem:[#allocation10 + $0xe0] sm:$0xff]
        %v749 = vld [vmem:[#allocation10 + $0xe8] sm:$0xff]
        %v750 = vld [vmem:[#allocation10 + $0xf0] sm:$0xff]
        %v751 = vld [vmem:[#allocation10 + $0xf8] sm:$0xff]
        %v784 = vunpack.c.l.b16 %v720
        %v785 = vunpack.c.h.b16 %v720
        %v786 = vunpack.c.l.b16 %v721
        %v787 = vunpack.c.h.b16 %v721
        %v788 = vunpack.c.l.b16 %v722
        %v789 = vunpack.c.h.b16 %v722
        %v790 = vunpack.c.l.b16 %v723
        %v791 = vunpack.c.h.b16 %v723
        %v792 = vunpack.c.l.b16 %v724
        %v793 = vunpack.c.h.b16 %v724
        %v794 = vunpack.c.l.b16 %v725
        %v795 = vunpack.c.h.b16 %v725
        %v796 = vunpack.c.l.b16 %v726
        %v797 = vunpack.c.h.b16 %v726
        %v798 = vunpack.c.l.b16 %v727
        %v799 = vunpack.c.h.b16 %v727
        %v800 = vunpack.c.l.b16 %v728
        %v801 = vunpack.c.h.b16 %v728
        %v802 = vunpack.c.l.b16 %v729
        %v803 = vunpack.c.h.b16 %v729
        %v804 = vunpack.c.l.b16 %v730
        %v805 = vunpack.c.h.b16 %v730
        %v806 = vunpack.c.l.b16 %v731
        %v807 = vunpack.c.h.b16 %v731
        %v808 = vunpack.c.l.b16 %v732
        %v809 = vunpack.c.h.b16 %v732
        %v810 = vunpack.c.l.b16 %v733
        %v811 = vunpack.c.h.b16 %v733
        %v812 = vunpack.c.l.b16 %v734
        %v813 = vunpack.c.h.b16 %v734
        %v814 = vunpack.c.l.b16 %v735
        %v815 = vunpack.c.h.b16 %v735
        %v816 = vunpack.c.l.b16 %v736
        %v817 = vunpack.c.h.b16 %v736
        %v818 = vunpack.c.l.b16 %v737
        %v819 = vunpack.c.h.b16 %v737
        %v820 = vunpack.c.l.b16 %v738
        %v821 = vunpack.c.h.b16 %v738
        %v822 = vunpack.c.l.b16 %v739
        %v823 = vunpack.c.h.b16 %v739
        %v824 = vunpack.c.l.b16 %v740
        %v825 = vunpack.c.h.b16 %v740
        %v826 = vunpack.c.l.b16 %v741
        %v827 = vunpack.c.h.b16 %v741
        %v828 = vunpack.c.l.b16 %v742
        %v829 = vunpack.c.h.b16 %v742
        %v830 = vunpack.c.l.b16 %v743
        %v831 = vunpack.c.h.b16 %v743
        %v832 = vunpack.c.l.b16 %v744
        %v833 = vunpack.c.h.b16 %v744
        %v834 = vunpack.c.l.b16 %v745
        %v835 = vunpack.c.h.b16 %v745
        %v836 = vunpack.c.l.b16 %v746
        %v837 = vunpack.c.h.b16 %v746
        %v838 = vunpack.c.l.b16 %v747
        %v839 = vunpack.c.h.b16 %v747
        %v840 = vunpack.c.l.b16 %v748
        %v841 = vunpack.c.h.b16 %v748
        %v842 = vunpack.c.l.b16 %v749
        %v843 = vunpack.c.h.b16 %v749
        %v844 = vunpack.c.l.b16 %v750
        %v845 = vunpack.c.h.b16 %v750
        %v846 = vunpack.c.l.b16 %v751
        %v847 = vunpack.c.h.b16 %v751
        %v848 = vpack.c.b16 %v788, %v784
        %v849 = vpack.c.b16 %v789, %v785
        %v850 = vpack.c.b16 %v790, %v786
        %v851 = vpack.c.b16 %v791, %v787
        %v852 = vpack.c.b16 %v796, %v792
        %v853 = vpack.c.b16 %v797, %v793
        %v854 = vpack.c.b16 %v798, %v794
        %v855 = vpack.c.b16 %v799, %v795
        %v856 = vpack.c.b16 %v804, %v800
        %v857 = vpack.c.b16 %v805, %v801
        %v858 = vpack.c.b16 %v806, %v802
        %v859 = vpack.c.b16 %v807, %v803
        %v860 = vpack.c.b16 %v812, %v808
        %v861 = vpack.c.b16 %v813, %v809
        %v862 = vpack.c.b16 %v814, %v810
        %v863 = vpack.c.b16 %v815, %v811
        %v864 = vpack.c.b16 %v820, %v816
        %v865 = vpack.c.b16 %v821, %v817
        %v866 = vpack.c.b16 %v822, %v818
        %v867 = vpack.c.b16 %v823, %v819
        %v868 = vpack.c.b16 %v828, %v824
        %v869 = vpack.c.b16 %v829, %v825
        %v870 = vpack.c.b16 %v830, %v826
        %v871 = vpack.c.b16 %v831, %v827
        %v872 = vpack.c.b16 %v836, %v832
        %v873 = vpack.c.b16 %v837, %v833
        %v874 = vpack.c.b16 %v838, %v834
        %v875 = vpack.c.b16 %v839, %v835
        %v876 = vpack.c.b16 %v844, %v840
        %v877 = vpack.c.b16 %v845, %v841
        %v878 = vpack.c.b16 %v846, %v842
        %v879 = vpack.c.b16 %v847, %v843
        %912 = vmatpush.bf16.msra.mxu0 %v876
        %913 = vmatpush.bf16.msra.mxu0 %v872
        %914 = vmatpush.bf16.msra.mxu0 %v868
        %915 = vmatpush.bf16.msra.mxu0 %v864
        %916 = vmatpush.bf16.msra.mxu0 %v860
        %917 = vmatpush.bf16.msra.mxu0 %v856
        %918 = vmatpush.bf16.msra.mxu0 %v852
        %919 = vmatpush.bf16.msra.mxu0 %v848
        %920 = vmatmul.bf16.gmra.mxu0 %v675
        %v921 = vpop.f32.mrf.mxu0
        %v922 = vadd.f32 0.0, %v921
        %v923 = vpop.f32.mrf.mxu0
        %v924 = vadd.f32 0.0, %v923
        %925 = vdwg.mxu0
        %926 = vmatpush.bf16.msra.mxu0 %v877
        %927 = vmatpush.bf16.msra.mxu0 %v873
        %928 = vmatpush.bf16.msra.mxu0 %v869
        %929 = vmatpush.bf16.msra.mxu0 %v865
        %930 = vmatpush.bf16.msra.mxu0 %v861
        %931 = vmatpush.bf16.msra.mxu0 %v857
        %932 = vmatpush.bf16.msra.mxu0 %v853
        %933 = vmatpush.bf16.msra.mxu0 %v849
        %934 = vmatmul.bf16.gmra.mxu0 %v675
        %v935 = vpop.f32.mrf.mxu0
        %v936 = vadd.f32 0.0, %v935
        %v937 = vpop.f32.mrf.mxu0
        %v938 = vadd.f32 0.0, %v937
        %939 = vdwg.mxu0
        %940 = vmatpush.bf16.msra.mxu0 %v878
        %941 = vmatpush.bf16.msra.mxu0 %v874
        %942 = vmatpush.bf16.msra.mxu0 %v870
        %943 = vmatpush.bf16.msra.mxu0 %v866
        %944 = vmatpush.bf16.msra.mxu0 %v862
        %945 = vmatpush.bf16.msra.mxu0 %v858
        %946 = vmatpush.bf16.msra.mxu0 %v854
        %947 = vmatpush.bf16.msra.mxu0 %v850
        %948 = vmatmul.bf16.gmra.mxu0 %v675
        %v949 = vpop.f32.mrf.mxu0
        %v950 = vadd.f32 0.0, %v949
        %v951 = vpop.f32.mrf.mxu0
        %v952 = vadd.f32 0.0, %v951
        %953 = vdwg.mxu0
        %954 = vmatpush.bf16.msra.mxu0 %v879
        %955 = vmatpush.bf16.msra.mxu0 %v875
        %956 = vmatpush.bf16.msra.mxu0 %v871
        %957 = vmatpush.bf16.msra.mxu0 %v867
        %958 = vmatpush.bf16.msra.mxu0 %v863
        %959 = vmatpush.bf16.msra.mxu0 %v859
        %960 = vmatpush.bf16.msra.mxu0 %v855
        %961 = vmatpush.bf16.msra.mxu0 %v851
        %962 = vmatmul.bf16.gmra.mxu0 %v675
        %v963 = vpop.f32.mrf.mxu0
        %v964 = vadd.f32 0.0, %v963
        %v965 = vpop.f32.mrf.mxu0
        %v966 = vadd.f32 0.0, %v965
        %967 = vdwg.mxu0
        %968 = vmatpush.bf16.msra.mxu0 %v877
        %969 = vmatpush.bf16.msra.mxu0 %v873
        %970 = vmatpush.bf16.msra.mxu0 %v869
        %971 = vmatpush.bf16.msra.mxu0 %v865
        %972 = vmatpush.bf16.msra.mxu0 %v861
        %973 = vmatpush.bf16.msra.mxu0 %v857
        %974 = vmatpush.bf16.msra.mxu0 %v853
        %975 = vmatpush.bf16.msra.mxu0 %v849
        %976 = vmatmul.bf16.gmra.mxu0 %v701
        %v977 = vpop.f32.mrf.mxu0
        %v978 = vadd.f32 0.0, %v977
        %v979 = vpop.f32.mrf.mxu0
        %980 = vdwg.mxu0
        %981 = vmatpush.bf16.msra.mxu0 %v879
        %982 = vmatpush.bf16.msra.mxu0 %v875
        %983 = vmatpush.bf16.msra.mxu0 %v871
        %984 = vmatpush.bf16.msra.mxu0 %v867
        %985 = vmatpush.bf16.msra.mxu0 %v863
        %986 = vmatpush.bf16.msra.mxu0 %v859
        %987 = vmatpush.bf16.msra.mxu0 %v855
        %988 = vmatpush.bf16.msra.mxu0 %v851
        %989 = vmatmul.bf16.gmra.mxu0 %v719
        %v990 = vpop.f32.mrf.mxu0
        %v991 = vadd.f32 0.0, %v990
        %v992 = vpop.f32.mrf.mxu0
        %993 = vdwg.mxu0
        %p994 = scmp.gt.s32.totalorder %s36, 0
        %s995 = scalar_select %p994, 1, 0
        %v996 = vstv %s995
        %vm997 = vcmp.eq.s32.totalorder %v996, 1
        %v998 = vsel %vm997, %v978, 0.0
        %p999 = scmp.lt.s32.totalorder %s36, 0
        %s1000 = scalar_select %p999, 1, 0
        %v1001 = vstv %s1000
        %vm1002 = vcmp.eq.s32.totalorder %v1001, 1
        %v1003 = vsel %vm1002, %v991, 0.0
        %v1004 = vlaneseq
        %v1005 = vshrl.u32 %v1004, 7
        %v1006 = vadd.s32 %v1005, 8
        %v1007 = vrot.slane %v936, 7
        %v1008 = vrot.slane %v938, 7
        %vm1009 = vcmp.lt.s32.totalorder %v1005, 1
        %v1010 = vsel %vm1009, %v1007, %v1008
        %v1011 = vsel %vm1009, %v1008, %v1007
        %v1012 = vrot.slane %v964, 1
        %v1013 = vrot.slane %v966, 1
        %vm1014 = vcmp.lt.s32.totalorder %v1005, 7
        %v1015 = vsel %vm1014, %v1012, %v1013
        %v1016 = vsel %vm1014, %v1013, %v1012
        %vm1017 = vcmp.eq.s32.totalorder %v1005, 0
        %vm1018 = vcmp.eq.s32.totalorder %v1006, 0
        %v1019 = vsel %vm1017, 1, 0
        %v1020 = vsel %vm1018, 1, 0
        %vm1021 = vcmp.eq.s32.totalorder %v1019, 1
        %vm1022 = vcmp.eq.s32.totalorder %v1020, 1
        %v1023 = vperm.slane %v998, 0
        %v1024 = vsel %vm1021, %v1023, %v1011
        %v1025 = vsel %vm1022, %v1023, %v1010
        %v1026 = vadd.f32 %v950, %v1024
        %v1027 = vadd.f32 %v952, %v1025
        %vm1028 = vcmp.eq.s32.totalorder %v1005, 15
        %vm1029 = vcmp.eq.s32.totalorder %v1006, 15
        %v1030 = vsel %vm1028, 1, 0
        %v1031 = vsel %vm1029, 1, 0
        %vm1032 = vcmp.eq.s32.totalorder %v1030, 1
        %vm1033 = vcmp.eq.s32.totalorder %v1031, 1
        %v1034 = vperm.slane %v1003, 0
        %v1035 = vsel %vm1032, %v1034, %v1015
        %v1036 = vsel %vm1033, %v1034, %v1016
        %v1037 = vadd.f32 %v1026, %v1035
        %v1038 = vadd.f32 %v1027, %v1036
        %v1039 = vld [vmem:[%s7] sm:$0x1]
        %v1041 = vperm.slane %v1039, 0
        %v1043 = vmul.f32 %v922, %v1041
        %v1044 = vmul.f32 %v924, %v1041
        %v1045 = vld [vmem:[%s8] sm:$0x1]
        %v1047 = vperm.slane %v1045, 0
        %v1049 = vadd.f32 %v1043, %v1047
        %v1050 = vadd.f32 %v1044, %v1047
        %v1051 = vmax.f32 %v1049, 0.0
        %v1052 = vmax.f32 %v1050, 0.0
        %v1053 = vld [vmem:[%s9] sm:$0x1]
        %v1055 = vperm.slane %v1053, 0
        %v1057 = vmul.f32 %v1037, %v1055
        %v1058 = vmul.f32 %v1038, %v1055
        %v1059 = vld [vmem:[%s10] sm:$0x1]
        %v1061 = vperm.slane %v1059, 0
        %v1063 = vadd.f32 %v1057, %v1061
        %v1064 = vadd.f32 %v1058, %v1061
        %v1065 = vmax.f32 %v1063, 0.0
        %v1066 = vmax.f32 %v1064, 0.0
        %v1067 = vpack.c.bf16 %v1051, %v1051
        %v1068 = vpack.c.bf16 %v1052, %v1052
        %1069 = vst [vmem:[%s564] sm:$0xf] %v1067
        %1070 = vst [vmem:[%s564 + $0x8] sm:$0xf] %v1068
        %v1071 = vpack.c.bf16 %v1065, %v1065
        %v1072 = vpack.c.bf16 %v1066, %v1066
        %1073 = vst [vmem:[%s564 + $0x4] sm:$0xf] %v1071
        %1074 = vst [vmem:[%s564 + $0xc] sm:$0xf] %v1072
        %s1075 = sand.u32 %s318, 1
        %s1076 = scalar_lea.sflag [#allocation4], %s1075
        %s1077 = sand.u32 %s318, 1
        %s1078 = smul.addr %s1077, 16
        %s1079 = scalar_lea.vmem [#allocation11], %s1078
        // Predicated region
        $region85: #{tpu_custom_call.1} parent=63 // pred_check
          %p1080 = pneg %p328
        $region86: #{tpu_custom_call.1} parent=63 // pred_check_branch
          %1082 = sbr.rel (%p1080) target = $region88
        $region87: #{tpu_custom_call.1} parent=63 // pred_region
          %s1083 = smul.u32 2, %s36
          %1085 = vsyncadd %s1076, 0
          %s1086 = smul.addr %s1083, 2
          %s1087 = smul.addr %s37, 4
          %s1088 = sadd.s32 %s1086, %s1087
          %s1089 = smul.addr %s1088, 4
          %s1090 = scalar_lea.hbm %s11, %s1089
          %s1091 = sshll.u32 %s1079, 4
          %s1092 = int_to_ptr.vmem [resolvable:$true] %s1091
          %s1093 = sshll.u32 %s1090, 4
          %s1094 = int_to_ptr.hbm [resolvable:$true] %s1093
          %1099 = dma.vmem_to_hbm [thread:$0]  %s1092, 256, %s1094, %s1076, 128, 128, 8
        $region88: #{tpu_custom_call.1} parent=63 // pred_fallthru
          _
      $region64: #{tpu_custom_call.1} parent=5 // pred_fallthru
        _
      %p1100 = scmp.le.s32.totalorder 2, %s27
      // Predicated region
      $region89: #{tpu_custom_call.1} parent=5 // pred_check
        %p1101 = pneg %p1100
      $region90: #{tpu_custom_call.1} parent=5 // pred_check_branch
        %1103 = sbr.rel (%p1101) target = $region92
      $region91: #{tpu_custom_call.1} parent=5 // pred_region
        %s1104 = ssub.s32 %s27, 2
        // Predicated region
        $region93: #{tpu_custom_call.1} parent=91 // pred_check
          %p1105 = pneg %p334
        $region94: #{tpu_custom_call.1} parent=91 // pred_check_branch
          %1107 = sbr.rel (%p1105) target = $region96
        $region95: #{tpu_custom_call.1} parent=91 // pred_region
          %s1108 = sand.u32 %s319, 1
          %s1109 = scalar_lea.sflag [#allocation4], %s1108
          %s1110 = sand.u32 %s319, 1
          %s1111 = smul.addr %s1110, 16
          %s1112 = scalar_lea.vmem [#allocation11], %s1111
          %1114 = dma.done %s1109, 256
        $region96: #{tpu_custom_call.1} parent=91 // pred_fallthru
          _
      $region92: #{tpu_custom_call.1} parent=5 // pred_fallthru
        _
    $region6: #{tpu_custom_call.1} parent=1 // loop_footer
      %s31 = sadd.s32 1, %s27
    $region7: #{tpu_custom_call.1} parent=1 // loop_footer_branch
      %26 = sbr.rel target = $region3
    $region8: #{tpu_custom_call.1} parent=1 // loop_exit
      _
    %1115 = vsyncpa [#allocation3], 1
    %s1116 = scalar_lea.sflag [#allocation3], 1
    %1117 = vsyncpa %s1116, 1
    %1118 = vsyncpa [#allocation6], 1
    %s1119 = scalar_lea.sflag [#allocation6], 1
    %1120 = vsyncpa %s1119, 1
    %1121 = vsyncpa [#allocation9], 1
    %1122 = vsyncpa [#allocation4], 1
    %s1123 = scalar_lea.sflag [#allocation4], 1
    %1124 = vsyncpa %s1123, 1

</llo_original>
